<compile_context>
chip_gen: v7x
topology: tpu7x:2x2x1
jax: 0.10.0
libtpu: 0.0.40
codegen_flags: <defaults>
</compile_context>

<pallas_src>
import functools

import jax
import jax.numpy as jnp
from jax.experimental import pallas as pl
from jax.experimental.pallas import tpu as pltpu

LANES = 128
SUBLANES = 8
VMEM_LIMIT_BYTES = 48 * 1024 * 1024   # safe on v5e/v6e (128 MiB) and v7x (64 MiB)


# ----------------------------------------------------------------------------
# Abstract base class, mirroring the PyTorch module exactly.
# ----------------------------------------------------------------------------
class BaseLossFunction:
    def __init__(self):
        # PyTorch __init__ only calls super().__init__(); no parameters.
        pass

    def forward(self, input, output, label):
        # TODO(synk): abstract in the reference module -- no forward semantics
        # to translate; concrete subclasses must override this.
        raise NotImplementedError("forward method should be implemented")

    def __call__(self, input, output, label):
        return self.forward(input, output, label)


# ----------------------------------------------------------------------------
# Pallas kernel: tiled squared-error partial sums.
# Grid = (shards, inner_blocks): outer axis splits the row range across
# TensorCores (CORE_PARALLEL on v7x), inner axis is the reduction over row
# tiles.  Each shard accumulates into its own resident (acc_rows, 128) block.
# ----------------------------------------------------------------------------
def _sq_err_kernel(pred_ref, lbl_ref, part_ref, *, inner_blocks, tile_rows,
                   chunk_rows, acc_rows, valid_rows, needs_mask):
    c = pl.program_id(0)   # shard axis (core-parallel on v7x)
    i = pl.program_id(1)   # reduction axis

    @pl.when(i == 0)
    def _init():
        part_ref[...] = jnp.zeros_like(part_ref)

    tile_start = (c * inner_blocks + i) * tile_rows   # logical global row start
    n_chunks = tile_rows // chunk_rows
    folds = chunk_rows // acc_rows

    def accum_chunk(p_blk, l_blk, row0, masked):
        d = p_blk.astype(jnp.float32) - l_blk.astype(jnp.float32)
        d2 = d * d
        if masked:
            # Zero rows beyond the real array (ragged tail / clamped duplicate
            # blocks), keyed off the *logical* global row index.
            ridx = row0 + jax.lax.broadcasted_iota(
                jnp.int32, (chunk_rows, LANES), 0)
            d2 = jnp.where(ridx < valid_rows, d2, 0.0)
        if folds > 1:
            d2 = jnp.sum(d2.reshape(folds, acc_rows, LANES), axis=0)
        part_ref[...] += d2

    def process(masked):
        if n_chunks == 1:
            accum_chunk(pred_ref[...], lbl_ref[...], tile_start, masked)
        else:
            # Chunked fold: bounds elementwise temporaries to ~1 MiB and keeps
            # the accumulator dependency chain short, independent of tile size.
            @pl.loop(0, n_chunks)
            def _chunks(j):
                r0 = pl.multiple_of(j * chunk_rows, chunk_rows)
                accum_chunk(pred_ref[pl.ds(r0, chunk_rows), :],
                            lbl_ref[pl.ds(r0, chunk_rows), :],
                            tile_start + r0, masked)

    if needs_mask:
        # Only blocks that overlap the ragged tail (or are clamped duplicates)
        # pay for the mask; steady-state blocks take the mask-free path.
        touches_tail = tile_start + tile_rows > valid_rows

        @pl.when(touches_tail)
        def _masked():
            process(True)

        @pl.when(jnp.logical_not(touches_tail))
        def _clean():
            process(False)
    else:
        process(False)


# ----------------------------------------------------------------------------
# Wrapper
# ----------------------------------------------------------------------------
def _round_up(x, m):
    return ((x + m - 1) // m) * m


def _sublane_multiple(dtype):
    # (8,128) min tile for 4-byte dtypes, (16,128) for bf16/f16, (32,128) for 1B.
    itemsize = jnp.dtype(dtype).itemsize
    return max(SUBLANES, 32 // itemsize)


def _is_v7x_device():
    try:
        kind = jax.devices()[0].device_kind.lower()
    except Exception:
        return False
    return ("v7" in kind) or ("tpu7" in kind)


def pallas_mse_loss(output, label, *, tile_bytes=None, num_shards=None):
    """Mean squared error between `output` and `label` (any matching shapes),
    computed with a Pallas TPU reduction kernel. Returns a float32 scalar."""
    assert output.shape == label.shape, "output/label shapes must match"
    n = int(output.size)

    is_v7 = _is_v7x_device()
    if tile_bytes is None:
        # 8 MiB/input blocks on v7x (3.2 TB/s HBM), 4 MiB elsewhere.
        tile_bytes = (8 << 20) if is_v7 else (4 << 20)
    if num_shards is None:
        # Shard axis only helps where there are two TensorCores to feed.
        num_shards = 2 if is_v7 else 1

    # No wrapper-side upcast: DMA native dtype, cast to f32 inside the kernel.
    flat_o = output.reshape(-1)
    flat_l = label.reshape(-1)

    # Pad only when the element count is not lane-aligned (rare for NN shapes).
    # Both tensors are padded identically with zeros, so padded diffs are 0
    # and the mean divides by the unpadded count n.
    pad = (-n) % LANES
    if pad:
        flat_o = jnp.pad(flat_o, (0, pad))
        flat_l = jnp.pad(flat_l, (0, pad))
    rows = flat_o.size // LANES
    o2d = flat_o.reshape(rows, LANES)
    l2d = flat_l.reshape(rows, LANES)

    sub_mult = max(_sublane_multiple(output.dtype),
                   _sublane_multiple(label.dtype))
    itemsize = max(jnp.dtype(output.dtype).itemsize,
                   jnp.dtype(label.dtype).itemsize)

    # Dtype-invariant block bytes -> row count scales with 1/itemsize.
    target_rows = max(sub_mult,
                      (tile_bytes // (LANES * itemsize)) // sub_mult * sub_mult)
    rows_r = _round_up(rows, sub_mult)
    tile_rows = min(target_rows, rows_r)

    # In-kernel chunk / accumulator geometry (all static, power-of-two when
    # it matters).
    if tile_rows <= 1024:
        chunk_rows = tile_rows
    else:
        chunk_rows = next((c for c in (512, 256, 128, 64, 32, 16, 8)
                           if tile_rows % c == 0), tile_rows)
    acc_rows = next((c for c in (128, 64, 32, 16, 8) if chunk_rows % c == 0),
                    chunk_rows)
    assert tile_rows % chunk_rows == 0 and chunk_rows % acc_rows == 0

    blocks_total = -(-rows // tile_rows)
    shards = max(1, min(num_shards, blocks_total))
    inner_blocks = -(-blocks_total // shards)

    needs_clamp = shards * inner_blocks > blocks_total
    needs_mask = shards * inner_blocks * tile_rows != rows

    def in_map(c_idx, i_idx):
        blk = c_idx * inner_blocks + i_idx
        if needs_clamp:
            # Never start a DMA beyond the array; duplicated blocks are
            # zeroed by the in-kernel row mask.
            blk = jnp.minimum(blk, blocks_total - 1)
        return (blk, 0)

    kernel = functools.partial(
        _sq_err_kernel, inner_blocks=inner_blocks, tile_rows=tile_rows,
        chunk_rows=chunk_rows, acc_rows=acc_rows, valid_rows=rows,
        needs_mask=needs_mask)

    def run(outer_sem):
        return pl.pallas_call(
            kernel,
            out_shape=jax.ShapeDtypeStruct((shards * acc_rows, LANES),
                                           jnp.float32),
            grid=(shards, inner_blocks),
            in_specs=[pl.BlockSpec((tile_rows, LANES), in_map),
                      pl.BlockSpec((tile_rows, LANES), in_map)],
            out_specs=pl.BlockSpec((acc_rows, LANES),
                                   lambda c_idx, i_idx: (c_idx, 0)),
            compiler_params=pltpu.CompilerParams(
                dimension_semantics=(outer_sem, pltpu.ARBITRARY),
                vmem_limit_bytes=VMEM_LIMIT_BYTES),
        )(o2d, l2d)

    use_core_parallel = is_v7 and shards > 1
    if use_core_parallel:
        # CORE_PARALLEL actually splits the shard axis across v7x's two
        # TensorCores; fall back gracefully if the toolchain rejects it.
        try:
            partials = run(pltpu.CORE_PARALLEL)
        except Exception:
            partials = run(pltpu.PARALLEL)
    elif shards > 1:
        partials = run(pltpu.PARALLEL)
    else:
        partials = run(pltpu.ARBITRARY)

    # Tiny final reduce (few KiB of f32 partials) + mean in plain JAX.
    return jnp.sum(partials) / n


# Concrete subclass demonstrating how the Pallas hot path plugs into the
# BaseLossFunction interface (input is ignored, matching typical loss usage).
class PallasMSELoss(BaseLossFunction):
    def forward(self, input, output, label):
        return pallas_mse_loss(output, label)


if __name__ == "__main__":
    key = jax.random.PRNGKey(0)
    k1, k2, k3 = jax.random.split(key, 3)

    # Small NCHW-shaped tensors consistent with a trainer's (input, output, label).
    x = jax.random.normal(k1, (2, 4, 16, 16), dtype=jnp.float32)       # input
    output = jax.random.normal(k2, (2, 4, 16, 16), dtype=jnp.float32)  # model output
    label = jax.random.normal(k3, (2, 4, 16, 16), dtype=jnp.float32)   # target

    # Base class stays abstract, exactly like the PyTorch module.
    base = BaseLossFunction()
    try:
        base(x, output, label)
        raise AssertionError("BaseLossFunction.forward should have raised")
    except NotImplementedError:
        pass

    # Concrete subclass runs the Pallas reduction kernel (single-block path).
    loss_fn = PallasMSELoss()
    loss = jax.block_until_ready(loss_fn(x, output, label))
    ref = jnp.mean((output - label) ** 2)
    assert jnp.allclose(loss, ref, rtol=1e-5, atol=1e-5), (loss, ref)

    # Multi-block path (tiny 8-row tiles) on the same data.
    loss_mb = jax.block_until_ready(
        pallas_mse_loss(output, label, tile_bytes=8 * LANES * 4))
    assert jnp.allclose(loss_mb, ref, rtol=1e-5, atol=1e-5), (loss_mb, ref)

    # Ragged element count: exercises minimal lane padding + masked tail block.
    k4, k5 = jax.random.split(k3)
    o_r = jax.random.normal(k4, (3, 5, 7, 11), dtype=jnp.float32)
    l_r = jax.random.normal(k5, (3, 5, 7, 11), dtype=jnp.float32)
    loss_r = jax.block_until_ready(pallas_mse_loss(o_r, l_r))
    ref_r = jnp.mean((o_r - l_r) ** 2)
    assert jnp.allclose(loss_r, ref_r, rtol=1e-5, atol=1e-5), (loss_r, ref_r)

    # Odd block count with 2 shards: exercises index clamp + gated row mask.
    k6, k7 = jax.random.split(k5)
    o_c = jax.random.normal(k6, (3, 8, 128), dtype=jnp.float32)
    l_c = jax.random.normal(k7, (3, 8, 128), dtype=jnp.float32)
    loss_c = jax.block_until_ready(
        pallas_mse_loss(o_c, l_c, tile_bytes=8 * LANES * 4, num_shards=2))
    ref_c = jnp.mean((o_c - l_c) ** 2)
    assert jnp.allclose(loss_c, ref_c, rtol=1e-5, atol=1e-5), (loss_c, ref_c)

    # bf16 inputs travel to the kernel in native dtype (no wrapper upcast).
    o_b = output.astype(jnp.bfloat16)
    l_b = label.astype(jnp.bfloat16)
    loss_b = jax.block_until_ready(pallas_mse_loss(o_b, l_b))
    ref_b = jnp.mean((o_b.astype(jnp.float32) - l_b.astype(jnp.float32)) ** 2)
    assert jnp.allclose(loss_b, ref_b, rtol=1e-3, atol=1e-3), (loss_b, ref_b)

    # Larger ragged tensor: exercises the production path (default 4 MiB
    # blocks, pl.loop chunked fold, multi-block accumulation, masked tail).
    k8, k9 = jax.random.split(k7)
    o_big = jax.random.normal(k8, (63, 500, 129), dtype=jnp.float32)
    l_big = jax.random.normal(k9, (63, 500, 129), dtype=jnp.float32)
    loss_big = jax.block_until_ready(pallas_mse_loss(o_big, l_big))
    ref_big = jnp.mean((o_big - l_big) ** 2)
    assert jnp.allclose(loss_big, ref_big, rtol=1e-4, atol=1e-5), (loss_big, ref_big)

    print("KERNEL_OK")
</pallas_src>

<mosaic_0001>
module attributes {stable_mosaic.version = 11 : i64} {
  func.func @_sq_err_kernel(%arg0: i32, %arg1: i32, %arg2: memref<16x128xf32, #tpu.memory_space<vmem>>, %arg3: memref<16x128xf32, #tpu.memory_space<vmem>>, %arg4: memref<16x128xf32, #tpu.memory_space<vmem>>) attributes {dimension_semantics = [#tpu.dimension_semantics<arbitrary>, #tpu.dimension_semantics<arbitrary>], iteration_bounds = array<i64: 1, 1>, scalar_prefetch = 0 : i64, scratch_operands = 0 : i64, tpu.core_type = #tpu.core_type<tc>, window_params = [{transform_indices = @transform_0, window_bounds = array<i64: 16, 128>}, {transform_indices = @transform_1, window_bounds = array<i64: 16, 128>}, {transform_indices = @transform_2, window_bounds = array<i64: 16, 128>}]} {
    %c0_i32 = arith.constant 0 : i32
    %0 = arith.cmpi eq, %arg1, %c0_i32 : i32
    %1 = arith.extui %0 : i1 to i32
    %c0_i32_0 = arith.constant 0 : i32
    %2 = arith.cmpi ne, %1, %c0_i32_0 : i32
    scf.if %2 {
      %cst = arith.constant 0.000000e+00 : f32
      %10 = vector.broadcast %cst : f32 to vector<16x128xf32>
      %c0_8 = arith.constant 0 : index
      %c0_9 = arith.constant 0 : index
      %11 = vector.load %arg4[%c0_8, %c0_9] : memref<16x128xf32, #tpu.memory_space<vmem>>, vector<16x128xf32>
      tpu.vector_store %arg4[%c0_8, %c0_9], %10 {strides = array<i32>} : memref<16x128xf32, #tpu.memory_space<vmem>>, vector<16x128xf32>,
    } else {
    }
    %c0 = arith.constant 0 : index
    %c0_1 = arith.constant 0 : index
    %3 = vector.load %arg2[%c0, %c0_1] : memref<16x128xf32, #tpu.memory_space<vmem>>, vector<16x128xf32>
    %c0_2 = arith.constant 0 : index
    %c0_3 = arith.constant 0 : index
    %4 = vector.load %arg3[%c0_2, %c0_3] : memref<16x128xf32, #tpu.memory_space<vmem>>, vector<16x128xf32>
    %5 = arith.subf %3, %4 : vector<16x128xf32>
    %6 = arith.mulf %5, %5 : vector<16x128xf32>
    %c0_4 = arith.constant 0 : index
    %c0_5 = arith.constant 0 : index
    %7 = vector.load %arg4[%c0_4, %c0_5] : memref<16x128xf32, #tpu.memory_space<vmem>>, vector<16x128xf32>
    %8 = arith.addf %7, %6 : vector<16x128xf32>
    %c0_6 = arith.constant 0 : index
    %c0_7 = arith.constant 0 : index
    %9 = vector.load %arg4[%c0_6, %c0_7] : memref<16x128xf32, #tpu.memory_space<vmem>>, vector<16x128xf32>
    tpu.vector_store %arg4[%c0_6, %c0_7], %8 {strides = array<i32>} : memref<16x128xf32, #tpu.memory_space<vmem>>, vector<16x128xf32>,
    return
  }
  func.func @transform_0(%arg0: i32, %arg1: i32) -> (i32, i32) {
    %c1_i32 = arith.constant 1 : i32
    %0 = arith.muli %arg0, %c1_i32 : i32
    %1 = arith.addi %0, %arg1 : i32
    %c0_i32 = arith.constant 0 : i32
    %c0_i32_0 = arith.constant 0 : i32
    return %1, %c0_i32 : i32, i32
  }
  func.func @transform_1(%arg0: i32, %arg1: i32) -> (i32, i32) {
    %c1_i32 = arith.constant 1 : i32
    %0 = arith.muli %arg0, %c1_i32 : i32
    %1 = arith.addi %0, %arg1 : i32
    %c0_i32 = arith.constant 0 : i32
    %c0_i32_0 = arith.constant 0 : i32
    return %1, %c0_i32 : i32, i32
  }
  func.func @transform_2(%arg0: i32, %arg1: i32) -> (i32, i32) {
    %c0_i32 = arith.constant 0 : i32
    %c0_i32_0 = arith.constant 0 : i32
    return %arg0, %c0_i32 : i32, i32
  }
}

</mosaic_0001>

<llo_original>
// kernel: tpu_custom_call.1
$region0: #{tpu_custom_call.1}
  #allocation0 [shape = 'u32[]', space=smem, size = 0x4, offset = 0x4, fixed_abs, tag = 'smem constant byte address 0x4 - core index']
  #allocation1 [shape = 'u32[144,128]{1,0:T(1,128)}', space=vmem, size = 0x12000, scoped, tag = 'internal scratch']
  %s0 = inlined_call_operand.hbm [shape: f32[16,128], index: 0, kind: input, shape index: {}]
  %s1 = inlined_call_operand.hbm [shape: f32[16,128], index: 1, kind: input, shape index: {}]
  %s2 = inlined_call_operand.hbm [shape: f32[16,128], index: 2, kind: output, shape index: {}]
  %s3 = sld [smem:[#allocation0]]
  $region30: #{tpu_custom_call.1} parent=0
    _
  %s5 = ssub.s32 1, %s3
  %s6 = scalar_select 0, %s5, %s3
  $region1: #{tpu_custom_call.1} parent=0
    #allocation2 [shape = 'u8[8192]{0}', space=vmem, size = 0x2000, scoped, tag = 'input window, operand 0, single buffered']
    #allocation3 [shape = 's32[1]{0}', space=sflag, size = 0x4, scoped, tag = 'scoped memory for tpu_custom_call.1']
    #allocation4 [shape = 's32[1]{0}', space=sflag, size = 0x4, scoped, tag = 'scoped memory for tpu_custom_call.1']
    #allocation5 [shape = 'u8[8192]{0}', space=vmem, size = 0x2000, scoped, tag = 'input window, operand 1, single buffered']
    #allocation6 [shape = 's32[1]{0}', space=sflag, size = 0x4, scoped, tag = 'scoped memory for tpu_custom_call.1']
    #allocation7 [shape = 'u8[8192]{0}', space=vmem, size = 0x2000, scoped, tag = 'output window, operand 0, single buffered']
    %7 = vsyncpa [#allocation3], 0
    %8 = vsyncpa [#allocation6], 0
    %9 = vsyncpa [#allocation4], 0
    // Predicated region
    $region2: #{tpu_custom_call.1} parent=1 // pred_check
      _
    $region3: #{tpu_custom_call.1} parent=1 // pred_check_branch
      %11 = sbr.rel (0) target = $region5
    $region4: #{tpu_custom_call.1} parent=1 // pred_region
      %s12 = sadd.s32 0, 0
      %s13 = smul.u32 2, %s12
      %s15 = ssub.s32 256, 256
      %16 = vsyncadd [#allocation3], %s15
      %s17 = smul.addr %s13, 128
      %s18 = scalar_lea.hbm %s0, %s17
      %s19 = sshll.u32 [#allocation2], 4
      %s20 = int_to_ptr.vmem [resolvable:$true] %s19
      %25 = dma.hbm_to_vmem [thread:$0]  %s18, 256, %s20, [#allocation3], 128, 128, 8
    $region5: #{tpu_custom_call.1} parent=1 // pred_fallthru
      _
    // Predicated region
    $region6: #{tpu_custom_call.1} parent=1 // pred_check
      _
    $region7: #{tpu_custom_call.1} parent=1 // pred_check_branch
      %27 = sbr.rel (0) target = $region9
    $region8: #{tpu_custom_call.1} parent=1 // pred_region
      %s28 = sadd.s32 0, 0
      %s29 = smul.u32 2, %s28
      %s31 = ssub.s32 256, 256
      %32 = vsyncadd [#allocation6], %s31
      %s33 = smul.addr %s29, 128
      %s34 = scalar_lea.hbm %s1, %s33
      %s35 = sshll.u32 [#allocation5], 4
      %s36 = int_to_ptr.vmem [resolvable:$true] %s35
      %41 = dma.hbm_to_vmem [thread:$0]  %s34, 256, %s36, [#allocation6], 128, 128, 8
    $region9: #{tpu_custom_call.1} parent=1 // pred_fallthru
      _
    // Predicated region
    $region10: #{tpu_custom_call.1} parent=1 // pred_check
      _
    $region11: #{tpu_custom_call.1} parent=1 // pred_check_branch
      %43 = sbr.rel (0) target = $region13
    $region12: #{tpu_custom_call.1} parent=1 // pred_region
      %44 = dma.done [#allocation3], 256
    $region13: #{tpu_custom_call.1} parent=1 // pred_fallthru
      _
    // Predicated region
    $region14: #{tpu_custom_call.1} parent=1 // pred_check
      _
    $region15: #{tpu_custom_call.1} parent=1 // pred_check_branch
      %46 = sbr.rel (0) target = $region17
    $region16: #{tpu_custom_call.1} parent=1 // pred_region
      %47 = dma.done [#allocation6], 256
    $region17: #{tpu_custom_call.1} parent=1 // pred_fallthru
      _
    %s48 = sadd.s32 0, 0
    %s49 = smul.u32 2, %s48
    %s50 = sadd.s32 0, 0
    %s51 = smul.u32 2, %s50
    %p52 = scmp.eq.s32.totalorder 0, 0
    // Predicated region
    $region18: #{tpu_custom_call.1} parent=1 // pred_check
      %p53 = pneg %p52
    $region19: #{tpu_custom_call.1} parent=1 // pred_check_branch
      %55 = sbr.rel (%p53) target = $region21
    $region20: #{tpu_custom_call.1} parent=1 // pred_region
      %56 = vst [vmem:[#allocation7] sm:$0xff] 0.0
      %57 = vst [vmem:[#allocation7 + $0x8] sm:$0xff] 0.0
    $region21: #{tpu_custom_call.1} parent=1 // pred_fallthru
      _
    %v58 = vld [vmem:[#allocation2] sm:$0xff]
    %v59 = vld [vmem:[#allocation2 + $0x8] sm:$0xff]
    %v60 = vld [vmem:[#allocation5] sm:$0xff]
    %v61 = vld [vmem:[#allocation5 + $0x8] sm:$0xff]
    %v62 = vsub.f32 %v58, %v60
    %v63 = vsub.f32 %v59, %v61
    %v64 = vmul.f32 %v62, %v62
    %v65 = vmul.f32 %v63, %v63
    %v66 = vld [vmem:[#allocation7] sm:$0xff]
    %v67 = vld [vmem:[#allocation7 + $0x8] sm:$0xff]
    %v68 = vadd.f32 %v66, %v64
    %v69 = vadd.f32 %v67, %v65
    %70 = vst [vmem:[#allocation7] sm:$0xff] %v68
    %71 = vst [vmem:[#allocation7 + $0x8] sm:$0xff] %v69
    // Predicated region
    $region22: #{tpu_custom_call.1} parent=1 // pred_check
      _
    $region23: #{tpu_custom_call.1} parent=1 // pred_check_branch
      %73 = sbr.rel (0) target = $region25
    $region24: #{tpu_custom_call.1} parent=1 // pred_region
      %s75 = ssub.s32 256, 256
      %76 = vsyncadd [#allocation4], %s75
      %s77 = sshll.u32 [#allocation7], 4
      %s78 = int_to_ptr.vmem [resolvable:$true] %s77
      %83 = dma.vmem_to_hbm [thread:$0]  %s78, 256, %s2, [#allocation4], 128, 128, 8
    $region25: #{tpu_custom_call.1} parent=1 // pred_fallthru
      _
    // Predicated region
    $region26: #{tpu_custom_call.1} parent=1 // pred_check
      _
    $region27: #{tpu_custom_call.1} parent=1 // pred_check_branch
      %85 = sbr.rel (0) target = $region29
    $region28: #{tpu_custom_call.1} parent=1 // pred_region
      %86 = dma.done [#allocation4], 256
    $region29: #{tpu_custom_call.1} parent=1 // pred_fallthru
      _
    %87 = vsyncpa [#allocation3], 1
    %88 = vsyncpa [#allocation6], 1
    %89 = vsyncpa [#allocation4], 1

</llo_original>
